<compile_context>
chip_gen: v7x
topology: tpu7x:2x2x1
jax: 0.10.0
libtpu: 0.0.40
codegen_flags: <defaults>
</compile_context>

<pallas_src>
import jax
import jax.numpy as jnp
from jax.experimental import pallas as pl
from jax.experimental.pallas import tpu as pltpu


def add_relu_kernel(a_ref, b_ref, o_ref):
    # Fused add + ReLU on the VPU; dtype-matched zero, no extra broadcasts.
    s = a_ref[...] + b_ref[...]
    o_ref[...] = jnp.maximum(s, jnp.asarray(0, dtype=s.dtype))


def _sublane(dtype) -> int:
    # Minimum sublane multiple per element width (f32:8, bf16:16, int8/fp8:32).
    return {4: 8, 2: 16, 1: 32}.get(jnp.dtype(dtype).itemsize, 8)


_SMALL_BYTES = 256 * 1024          # below this, fused XLA elementwise wins (dispatch/DMA setup dominates)
_MIN_BLOCKS = 4                    # >=2 per TensorCore on v7x + restores in/out DMA overlap
_VMEM_LIMIT = 48 * 1024 * 1024     # explicit scoped-VMEM limit; safe on v5e/v6e/v7x


def _cdiv(a, b):
    return -(-a // b)


def add_relu(x388, x380, *, target_block_bytes=4 * 1024 * 1024):
    """relu(x388 + x380); shape/dtype preserving."""
    assert x388.shape == x380.shape and x388.dtype == x380.dtype
    orig_shape = x388.shape
    dtype = x388.dtype
    total = int(x388.size)
    itemsize = jnp.dtype(dtype).itemsize
    sub = _sublane(dtype)
    zero = jnp.asarray(0, dtype=dtype)

    # --- Small-input fast path: Pallas dispatch is pure overhead here. -----
    if total * itemsize < _SMALL_BYTES:
        return jnp.maximum(x388 + x380, zero)

    # --- Pick a lane-dense slab (rows, width) reachable by a FREE reshape. --
    rows = width = None
    for w in (1024, 512, 256, 128):
        if total % w == 0 and (total // w) % sub == 0:
            rows, width = total // w, w
            break
    if rows is None:
        # Ragged fallback: plain jnp (2 reads + 1 write at roofline) instead of
        # the old pad-both-inputs + slice-output path (2-3x HBM traffic).
        return jnp.maximum(x388 + x380, zero)

    a = x388.reshape(rows, width)
    b = x380.reshape(rows, width)

    # --- Choose grid-step count / row tile. ---------------------------------
    # ~target_block_bytes per input per step, but at least _MIN_BLOCKS steps
    # (even count) so the pipeline overlaps and both v7x TCs get work.
    bytes_total = rows * width * itemsize
    max_blocks = rows // sub                                   # tr must stay >= sub
    nblk = max(1, _cdiv(bytes_total, target_block_bytes))
    nblk = max(nblk, min(_MIN_BLOCKS, max_blocks))
    nblk = min(nblk, max_blocks)
    if nblk >= 2 and nblk % 2:                                 # even split across 2 TCs (v7x)
        nblk = min(nblk + 1, max_blocks)
    groups_per_blk = _cdiv(max_blocks, nblk)                   # sublane groups per block
    tr = groups_per_blk * sub
    grid = (pl.cdiv(rows, tr),)  # partial last block handled by Pallas masking (safe: pure elementwise)

    out = pl.pallas_call(
        add_relu_kernel,
        out_shape=jax.ShapeDtypeStruct((rows, width), dtype),
        grid_spec=pltpu.PrefetchScalarGridSpec(
            num_scalar_prefetch=0,
            grid=grid,
            in_specs=[
                pl.BlockSpec((tr, width), lambda i: (i, 0)),
                pl.BlockSpec((tr, width), lambda i: (i, 0)),
            ],
            out_specs=pl.BlockSpec((tr, width), lambda i: (i, 0)),
        ),
        compiler_params=pltpu.CompilerParams(
            dimension_semantics=("parallel",),
            vmem_limit_bytes=_VMEM_LIMIT,
        ),
    )(a, b)

    return out.reshape(orig_shape)


if __name__ == "__main__":
    key = jax.random.PRNGKey(0)
    k1, k2, k3, k4, k5, k6 = jax.random.split(key, 6)

    # Module's actual shape (1, 1024, 14, 14): exercises the Pallas path
    # (reshapes cleanly to a (392, 512) lane-dense slab, 4 grid steps).
    x388 = jax.random.normal(k1, (1, 1024, 14, 14), dtype=jnp.float32)
    x380 = jax.random.normal(k2, (1, 1024, 14, 14), dtype=jnp.float32)
    out = jax.block_until_ready(add_relu(x388, x380))
    ref = jnp.maximum(x388 + x380, 0.0)
    assert out.shape == ref.shape and out.dtype == ref.dtype
    assert jnp.allclose(out, ref, atol=1e-6), "mismatch vs reference (pallas path)"

    # Tiny input: small-input fast path (no Pallas dispatch).
    t1 = jax.random.normal(k3, (2, 4, 16, 16), dtype=jnp.float32)
    t2 = jax.random.normal(k4, (2, 4, 16, 16), dtype=jnp.float32)
    out_t = jax.block_until_ready(add_relu(t1, t2))
    assert jnp.allclose(out_t, jnp.maximum(t1 + t2, 0.0), atol=1e-6), "mismatch (fast path)"

    # Ragged shape: zero-copy jnp fallback.
    r1 = jax.random.normal(k5, (3, 5, 7), dtype=jnp.float32)
    r2 = jax.random.normal(k6, (3, 5, 7), dtype=jnp.float32)
    out_r = jax.block_until_ready(add_relu(r1, r2))
    assert jnp.allclose(out_r, jnp.maximum(r1 + r2, 0.0), atol=1e-6), "mismatch (ragged path)"

    print("KERNEL_OK")
</pallas_src>

<mosaic_0001>
module attributes {stable_mosaic.version = 11 : i64} {
  func.func @add_relu_kernel(%arg0: i32, %arg1: memref<104x512xf32, #tpu.memory_space<vmem>>, %arg2: memref<104x512xf32, #tpu.memory_space<vmem>>, %arg3: memref<104x512xf32, #tpu.memory_space<vmem>>) attributes {dimension_semantics = [#tpu.dimension_semantics<parallel>], iteration_bounds = array<i64: 4>, scalar_prefetch = 0 : i64, scratch_operands = 0 : i64, tpu.core_type = #tpu.core_type<tc>, window_params = [{transform_indices = @transform_0, window_bounds = array<i64: 104, 512>}, {transform_indices = @transform_1, window_bounds = array<i64: 104, 512>}, {transform_indices = @transform_2, window_bounds = array<i64: 104, 512>}]} {
    %c0 = arith.constant 0 : index
    %c0_0 = arith.constant 0 : index
    %0 = vector.load %arg1[%c0, %c0_0] : memref<104x512xf32, #tpu.memory_space<vmem>>, vector<104x512xf32>
    %c0_1 = arith.constant 0 : index
    %c0_2 = arith.constant 0 : index
    %1 = vector.load %arg2[%c0_1, %c0_2] : memref<104x512xf32, #tpu.memory_space<vmem>>, vector<104x512xf32>
    %2 = arith.addf %0, %1 : vector<104x512xf32>
    %cst = arith.constant 0.000000e+00 : f32
    %3 = vector.broadcast %cst : f32 to vector<104x512xf32>
    %4 = arith.maximumf %2, %3 : vector<104x512xf32>
    %c0_3 = arith.constant 0 : index
    %c0_4 = arith.constant 0 : index
    %5 = vector.load %arg3[%c0_3, %c0_4] : memref<104x512xf32, #tpu.memory_space<vmem>>, vector<104x512xf32>
    tpu.vector_store %arg3[%c0_3, %c0_4], %4 {strides = array<i32>} : memref<104x512xf32, #tpu.memory_space<vmem>>, vector<104x512xf32>,
    return
  }
  func.func @transform_0(%arg0: i32) -> (i32, i32) {
    %c0_i32 = arith.constant 0 : i32
    %c0_i32_0 = arith.constant 0 : i32
    return %arg0, %c0_i32 : i32, i32
  }
  func.func @transform_1(%arg0: i32) -> (i32, i32) {
    %c0_i32 = arith.constant 0 : i32
    %c0_i32_0 = arith.constant 0 : i32
    return %arg0, %c0_i32 : i32, i32
  }
  func.func @transform_2(%arg0: i32) -> (i32, i32) {
    %c0_i32 = arith.constant 0 : i32
    %c0_i32_0 = arith.constant 0 : i32
    return %arg0, %c0_i32 : i32, i32
  }
}

</mosaic_0001>

<llo_original>
// kernel: tpu_custom_call.1
$region0: #{tpu_custom_call.1}
  #allocation0 [shape = 'u32[]', space=smem, size = 0x4, offset = 0x4, fixed_abs, tag = 'smem constant byte address 0x4 - core index']
  #allocation1 [shape = 'u32[144,128]{1,0:T(1,128)}', space=vmem, size = 0x12000, scoped, tag = 'internal scratch']
  %s0 = inlined_call_operand.hbm [shape: f32[392,512], index: 0, kind: input, shape index: {}]
  %s1 = inlined_call_operand.hbm [shape: f32[392,512], index: 1, kind: input, shape index: {}]
  %s2 = inlined_call_operand.hbm [shape: f32[392,512], index: 2, kind: output, shape index: {}]
  %s3 = sld [smem:[#allocation0]]
  $region49: #{tpu_custom_call.1} parent=0
    _
  %s5 = ssub.s32 1, %s3
  %s6 = scalar_select 0, %s5, %s3
  $region1: #{tpu_custom_call.1} parent=0
    #allocation2 [shape = 'u8[425984]{0}', space=vmem, size = 0x68000, scoped, tag = 'input window, operand 0']
    #allocation3 [shape = 's32[2]{0}', space=sflag, size = 0x8, scoped, tag = 'scoped memory for tpu_custom_call.1']
    #allocation4 [shape = 's32[2]{0}', space=sflag, size = 0x8, scoped, tag = 'scoped memory for tpu_custom_call.1']
    #allocation5 [shape = 'u8[425984]{0}', space=vmem, size = 0x68000, scoped, tag = 'input window, operand 1']
    #allocation6 [shape = 's32[2]{0}', space=sflag, size = 0x8, scoped, tag = 'scoped memory for tpu_custom_call.1']
    #allocation7 [shape = 'u8[425984]{0}', space=vmem, size = 0x68000, scoped, tag = 'output window, operand 0']
    %7 = vsyncpa [#allocation3], 0
    %s8 = scalar_lea.sflag [#allocation3], 1
    %9 = vsyncpa %s8, 0
    %10 = vsyncpa [#allocation6], 0
    %s11 = scalar_lea.sflag [#allocation6], 1
    %12 = vsyncpa %s11, 0
    %13 = vsyncpa [#allocation4], 0
    %s14 = scalar_lea.sflag [#allocation4], 1
    %15 = vsyncpa %s14, 0
    loop: start=0, step=1, limit=6
    $region2: #{tpu_custom_call.1} parent=1 // loop_pre_header
      _
    $region3: #{tpu_custom_call.1} parent=1 // loop_header
      %s17 = sphi 0, %s21
      %p18 = scmp.ge.s32.totalorder %s17, 6
      %s27 = sphi 0, %s29
      %s30 = sphi 0, %s27
      %s31 = sphi 0, %s30
      %s47 = sphi 0, %s31
      %s53 = sphi 0, %s55
      %s56 = sphi 0, %s53
      %s57 = sphi 0, %s56
      %s73 = sphi 0, %s57
      %s79 = sphi 0, %s81
      %s82 = sphi 0, %s79
      %s83 = sphi 0, %s82
      %s99 = sphi 0, %s83
    $region4: #{tpu_custom_call.1} parent=1 // loop_header_branch
      %20 = sbr.rel (%p18) target = $region8
    $region5: #{tpu_custom_call.1} parent=1 // loop_body
      %s22 = ssub.s32 %s17, 1
      %s23 = ssub.s32 %s17, 2
      %s24 = sadd.s32 %s17, 1
      %s25 = ssub.s32 %s17, %s24
      %p26 = scmp.eq.s32.totalorder %s25, 0
      %s28 = sadd.s32 %s27, 1
      %s29 = scalar_select %p26, %s27, %s28
      %p32 = pneg %p26
      %p33 = scmp.eq.s32.totalorder %s17, 3
      %p34 = por %p32, %p33
      %p35 = scmp.ne.s32.totalorder %s27, %s30
      %p36 = scmp.eq.s32.totalorder %s17, 0
      %p37 = por %p35, %p36
      %p38 = scmp.ne.s32.totalorder %s27, %s30
      %p39 = scmp.eq.s32.totalorder %s22, 3
      %p40 = por %p38, %p39
      %p41 = scmp.ne.s32.totalorder %s30, %s31
      %p42 = scmp.eq.s32.totalorder %s22, 0
      %p43 = por %p41, %p42
      %p44 = scmp.ne.s32.totalorder %s30, %s31
      %p45 = scmp.eq.s32.totalorder %s23, 3
      %p46 = por %p44, %p45
      %p48 = scmp.ne.s32.totalorder %s31, %s47
      %p49 = scmp.eq.s32.totalorder %s23, 0
      %p50 = por %p48, %p49
      %s51 = ssub.s32 %s17, %s24
      %p52 = scmp.eq.s32.totalorder %s51, 0
      %s54 = sadd.s32 %s53, 1
      %s55 = scalar_select %p52, %s53, %s54
      %p58 = pneg %p52
      %p59 = scmp.eq.s32.totalorder %s17, 3
      %p60 = por %p58, %p59
      %p61 = scmp.ne.s32.totalorder %s53, %s56
      %p62 = scmp.eq.s32.totalorder %s17, 0
      %p63 = por %p61, %p62
      %p64 = scmp.ne.s32.totalorder %s53, %s56
      %p65 = scmp.eq.s32.totalorder %s22, 3
      %p66 = por %p64, %p65
      %p67 = scmp.ne.s32.totalorder %s56, %s57
      %p68 = scmp.eq.s32.totalorder %s22, 0
      %p69 = por %p67, %p68
      %p70 = scmp.ne.s32.totalorder %s56, %s57
      %p71 = scmp.eq.s32.totalorder %s23, 3
      %p72 = por %p70, %p71
      %p74 = scmp.ne.s32.totalorder %s57, %s73
      %p75 = scmp.eq.s32.totalorder %s23, 0
      %p76 = por %p74, %p75
      %s77 = ssub.s32 %s17, %s24
      %p78 = scmp.eq.s32.totalorder %s77, 0
      %s80 = sadd.s32 %s79, 1
      %s81 = scalar_select %p78, %s79, %s80
      %p84 = pneg %p78
      %p85 = scmp.eq.s32.totalorder %s17, 3
      %p86 = por %p84, %p85
      %p87 = scmp.ne.s32.totalorder %s79, %s82
      %p88 = scmp.eq.s32.totalorder %s17, 0
      %p89 = por %p87, %p88
      %p90 = scmp.ne.s32.totalorder %s79, %s82
      %p91 = scmp.eq.s32.totalorder %s22, 3
      %p92 = por %p90, %p91
      %p93 = scmp.ne.s32.totalorder %s82, %s83
      %p94 = scmp.eq.s32.totalorder %s22, 0
      %p95 = por %p93, %p94
      %p96 = scmp.ne.s32.totalorder %s82, %s83
      %p97 = scmp.eq.s32.totalorder %s23, 3
      %p98 = por %p96, %p97
      %p100 = scmp.ne.s32.totalorder %s83, %s99
      %p101 = scmp.eq.s32.totalorder %s23, 0
      %p102 = por %p100, %p101
      %p103 = scmp.le.s32.totalorder 1, %s17
      %p104 = scmp.lt.s32.totalorder %s17, 5
      %p105 = pnand %p103, %p104
      %p106 = pneg %p105
      // Predicated region
      $region9: #{tpu_custom_call.1} parent=5 // pred_check
        _
      $region10: #{tpu_custom_call.1} parent=5 // pred_check_branch
        %108 = sbr.rel (%p105) target = $region12
      $region11: #{tpu_custom_call.1} parent=5 // pred_region
        %s109 = ssub.s32 %s17, 1
      $region12: #{tpu_custom_call.1} parent=5 // pred_fallthru
        _
      %p110 = scmp.lt.s32.totalorder %s17, 4
      // Predicated region
      $region13: #{tpu_custom_call.1} parent=5 // pred_check
        %p111 = pneg %p110
      $region14: #{tpu_custom_call.1} parent=5 // pred_check_branch
        %113 = sbr.rel (%p111) target = $region16
      $region15: #{tpu_custom_call.1} parent=5 // pred_region
        // Predicated region
        $region17: #{tpu_custom_call.1} parent=15 // pred_check
          %p114 = pneg %p37
        $region18: #{tpu_custom_call.1} parent=15 // pred_check_branch
          %116 = sbr.rel (%p114) target = $region20
        $region19: #{tpu_custom_call.1} parent=15 // pred_region
          %s117 = sand.u32 %s27, 1
          %s118 = scalar_lea.sflag [#allocation3], %s117
          %s119 = sand.u32 %s27, 1
          %s120 = smul.addr %s119, 416
          %s121 = scalar_lea.vmem [#allocation2], %s120
          %s122 = smul.u32 13, %s17
          %s123 = ssub.s32 49, %s122
          %p124 = scmp.lt.s32.totalorder %s123, 13
          %s125 = scalar_select %p124, %s123, 13
          %s126 = smul.u32 128, %s125
          %s127 = smul.u32 %s126, 4
          %s129 = ssub.s32 6656, %s127
          %130 = vsyncadd %s118, %s129
          %p131 = scmp.ne.s32.totalorder 0, %s127
          %s132 = smul.addr %s122, 4
          %s133 = smul.addr %s132, 128
          %s134 = scalar_lea.hbm %s0, %s133
          %s135 = smul.u32 32, %s125
          %s136 = sshll.u32 %s121, 4
          %s137 = int_to_ptr.vmem [resolvable:$true] %s136
          %s138 = sshll.u32 %s135, 4
          %142 = dma.hbm_to_vmem [thread:$0]  (%p131), %s134, %s138, %s137, %s118, 512, 512, 32
        $region20: #{tpu_custom_call.1} parent=15 // pred_fallthru
          _
        // Predicated region
        $region21: #{tpu_custom_call.1} parent=15 // pred_check
          %p143 = pneg %p63
        $region22: #{tpu_custom_call.1} parent=15 // pred_check_branch
          %145 = sbr.rel (%p143) target = $region24
        $region23: #{tpu_custom_call.1} parent=15 // pred_region
          %s146 = sand.u32 %s53, 1
          %s147 = scalar_lea.sflag [#allocation6], %s146
          %s148 = sand.u32 %s53, 1
          %s149 = smul.addr %s148, 416
          %s150 = scalar_lea.vmem [#allocation5], %s149
          %s151 = smul.u32 13, %s17
          %s152 = ssub.s32 49, %s151
          %p153 = scmp.lt.s32.totalorder %s152, 13
          %s154 = scalar_select %p153, %s152, 13
          %s155 = smul.u32 128, %s154
          %s156 = smul.u32 %s155, 4
          %s158 = ssub.s32 6656, %s156
          %159 = vsyncadd %s147, %s158
          %p160 = scmp.ne.s32.totalorder 0, %s156
          %s161 = smul.addr %s151, 4
          %s162 = smul.addr %s161, 128
          %s163 = scalar_lea.hbm %s1, %s162
          %s164 = smul.u32 32, %s154
          %s165 = sshll.u32 %s150, 4
          %s166 = int_to_ptr.vmem [resolvable:$true] %s165
          %s167 = sshll.u32 %s164, 4
          %171 = dma.hbm_to_vmem [thread:$0]  (%p160), %s163, %s167, %s166, %s147, 512, 512, 32
        $region24: #{tpu_custom_call.1} parent=15 // pred_fallthru
          _
      $region16: #{tpu_custom_call.1} parent=5 // pred_fallthru
        _
      %p172 = scmp.le.s32.totalorder 1, %s17
      %p173 = scmp.lt.s32.totalorder %s17, 5
      %p174 = pnand %p172, %p173
      %p175 = pneg %p174
      // Predicated region
      $region25: #{tpu_custom_call.1} parent=5 // pred_check
        _
      $region26: #{tpu_custom_call.1} parent=5 // pred_check_branch
        %177 = sbr.rel (%p174) target = $region28
      $region27: #{tpu_custom_call.1} parent=5 // pred_region
        %s178 = ssub.s32 %s17, 1
        %s179 = sand.u32 %s30, 1
        %s180 = scalar_lea.sflag [#allocation3], %s179
        %s181 = sand.u32 %s30, 1
        %s182 = smul.addr %s181, 416
        %s183 = scalar_lea.vmem [#allocation2], %s182
        // Predicated region
        $region29: #{tpu_custom_call.1} parent=27 // pred_check
          %p184 = pneg %p43
        $region30: #{tpu_custom_call.1} parent=27 // pred_check_branch
          %186 = sbr.rel (%p184) target = $region32
        $region31: #{tpu_custom_call.1} parent=27 // pred_region
          %187 = dma.done %s180, 6656
        $region32: #{tpu_custom_call.1} parent=27 // pred_fallthru
          _
        %s188 = sand.u32 %s56, 1
        %s189 = scalar_lea.sflag [#allocation6], %s188
        %s190 = sand.u32 %s56, 1
        %s191 = smul.addr %s190, 416
        %s192 = scalar_lea.vmem [#allocation5], %s191
        // Predicated region
        $region33: #{tpu_custom_call.1} parent=27 // pred_check
          %p193 = pneg %p69
        $region34: #{tpu_custom_call.1} parent=27 // pred_check_branch
          %195 = sbr.rel (%p193) target = $region36
        $region35: #{tpu_custom_call.1} parent=27 // pred_region
          %196 = dma.done %s189, 6656
        $region36: #{tpu_custom_call.1} parent=27 // pred_fallthru
          _
        %s197 = sand.u32 %s30, 1
        %s198 = scalar_lea.sflag [#allocation3], %s197
        %s199 = sand.u32 %s30, 1
        %s200 = smul.addr %s199, 416
        %s201 = scalar_lea.vmem [#allocation2], %s200
        %p202 = pneg %p43
        %p203 = pneg %p40
        %s204 = sand.u32 %s56, 1
        %s205 = scalar_lea.sflag [#allocation6], %s204
        %s206 = sand.u32 %s56, 1
        %s207 = smul.addr %s206, 416
        %s208 = scalar_lea.vmem [#allocation5], %s207
        %p209 = pneg %p69
        %p210 = pneg %p66
        %p211 = pneg %p95
        %p212 = pneg %p92
        %s213 = sand.u32 %s82, 1
        %s214 = scalar_lea.sflag [#allocation4], %s213
        %s215 = sand.u32 %s82, 1
        %s216 = smul.addr %s215, 416
        %s217 = scalar_lea.vmem [#allocation7], %s216
        %s218 = smul.u32 13, %s22
        %s219 = ssub.s32 49, %s218
        %p220 = scmp.lt.s32.totalorder %s219, 13
        %s221 = scalar_select %p220, %s219, 13
        %s222 = smul.u32 128, %s221
        %s223 = smul.u32 %s222, 4
        %s224 = smul.u32 13, %s22
        %s225 = ssub.s32 49, %s224
        %p226 = scmp.lt.s32.totalorder %s225, 13
        %s227 = scalar_select %p226, %s225, 13
        %s228 = smul.u32 128, %s227
        %s229 = smul.u32 %s228, 4
        %s230 = smul.u32 13, %s22
        %s231 = ssub.s32 49, %s230
        %p232 = scmp.lt.s32.totalorder %s231, 13
        %s233 = scalar_select %p232, %s231, 13
        %s234 = smul.u32 128, %s233
        %s235 = smul.u32 %s234, 4
        %v236 = vld [vmem:[%s183] sm:$0xff]
        %v237 = vld [vmem:[%s183 + $0x8] sm:$0xff]
        %v238 = vld [vmem:[%s183 + $0x10] sm:$0xff]
        %v239 = vld [vmem:[%s183 + $0x18] sm:$0xff]
        %v240 = vld [vmem:[%s183 + $0x20] sm:$0xff]
        %v241 = vld [vmem:[%s183 + $0x28] sm:$0xff]
        %v242 = vld [vmem:[%s183 + $0x30] sm:$0xff]
        %v243 = vld [vmem:[%s183 + $0x38] sm:$0xff]
        %v244 = vld [vmem:[%s183 + $0x40] sm:$0xff]
        %v245 = vld [vmem:[%s183 + $0x48] sm:$0xff]
        %v246 = vld [vmem:[%s183 + $0x50] sm:$0xff]
        %v247 = vld [vmem:[%s183 + $0x58] sm:$0xff]
        %v248 = vld [vmem:[%s183 + $0x60] sm:$0xff]
        %v249 = vld [vmem:[%s183 + $0x68] sm:$0xff]
        %v250 = vld [vmem:[%s183 + $0x70] sm:$0xff]
        %v251 = vld [vmem:[%s183 + $0x78] sm:$0xff]
        %v252 = vld [vmem:[%s183 + $0x80] sm:$0xff]
        %v253 = vld [vmem:[%s183 + $0x88] sm:$0xff]
        %v254 = vld [vmem:[%s183 + $0x90] sm:$0xff]
        %v255 = vld [vmem:[%s183 + $0x98] sm:$0xff]
        %v256 = vld [vmem:[%s183 + $0xa0] sm:$0xff]
        %v257 = vld [vmem:[%s183 + $0xa8] sm:$0xff]
        %v258 = vld [vmem:[%s183 + $0xb0] sm:$0xff]
        %v259 = vld [vmem:[%s183 + $0xb8] sm:$0xff]
        %v260 = vld [vmem:[%s183 + $0xc0] sm:$0xff]
        %v261 = vld [vmem:[%s183 + $0xc8] sm:$0xff]
        %v262 = vld [vmem:[%s183 + $0xd0] sm:$0xff]
        %v263 = vld [vmem:[%s183 + $0xd8] sm:$0xff]
        %v264 = vld [vmem:[%s183 + $0xe0] sm:$0xff]
        %v265 = vld [vmem:[%s183 + $0xe8] sm:$0xff]
        %v266 = vld [vmem:[%s183 + $0xf0] sm:$0xff]
        %v267 = vld [vmem:[%s183 + $0xf8] sm:$0xff]
        %v268 = vld [vmem:[%s183 + $0x100] sm:$0xff]
        %v269 = vld [vmem:[%s183 + $0x108] sm:$0xff]
        %v270 = vld [vmem:[%s183 + $0x110] sm:$0xff]
        %v271 = vld [vmem:[%s183 + $0x118] sm:$0xff]
        %v272 = vld [vmem:[%s183 + $0x120] sm:$0xff]
        %v273 = vld [vmem:[%s183 + $0x128] sm:$0xff]
        %v274 = vld [vmem:[%s183 + $0x130] sm:$0xff]
        %v275 = vld [vmem:[%s183 + $0x138] sm:$0xff]
        %v276 = vld [vmem:[%s183 + $0x140] sm:$0xff]
        %v277 = vld [vmem:[%s183 + $0x148] sm:$0xff]
        %v278 = vld [vmem:[%s183 + $0x150] sm:$0xff]
        %v279 = vld [vmem:[%s183 + $0x158] sm:$0xff]
        %v280 = vld [vmem:[%s183 + $0x160] sm:$0xff]
        %v281 = vld [vmem:[%s183 + $0x168] sm:$0xff]
        %v282 = vld [vmem:[%s183 + $0x170] sm:$0xff]
        %v283 = vld [vmem:[%s183 + $0x178] sm:$0xff]
        %v284 = vld [vmem:[%s183 + $0x180] sm:$0xff]
        %v285 = vld [vmem:[%s183 + $0x188] sm:$0xff]
        %v286 = vld [vmem:[%s183 + $0x190] sm:$0xff]
        %v287 = vld [vmem:[%s183 + $0x198] sm:$0xff]
        %v288 = vld [vmem:[%s192] sm:$0xff]
        %v289 = vld [vmem:[%s192 + $0x8] sm:$0xff]
        %v290 = vld [vmem:[%s192 + $0x10] sm:$0xff]
        %v291 = vld [vmem:[%s192 + $0x18] sm:$0xff]
        %v292 = vld [vmem:[%s192 + $0x20] sm:$0xff]
        %v293 = vld [vmem:[%s192 + $0x28] sm:$0xff]
        %v294 = vld [vmem:[%s192 + $0x30] sm:$0xff]
        %v295 = vld [vmem:[%s192 + $0x38] sm:$0xff]
        %v296 = vld [vmem:[%s192 + $0x40] sm:$0xff]
        %v297 = vld [vmem:[%s192 + $0x48] sm:$0xff]
        %v298 = vld [vmem:[%s192 + $0x50] sm:$0xff]
        %v299 = vld [vmem:[%s192 + $0x58] sm:$0xff]
        %v300 = vld [vmem:[%s192 + $0x60] sm:$0xff]
        %v301 = vld [vmem:[%s192 + $0x68] sm:$0xff]
        %v302 = vld [vmem:[%s192 + $0x70] sm:$0xff]
        %v303 = vld [vmem:[%s192 + $0x78] sm:$0xff]
        %v304 = vld [vmem:[%s192 + $0x80] sm:$0xff]
        %v305 = vld [vmem:[%s192 + $0x88] sm:$0xff]
        %v306 = vld [vmem:[%s192 + $0x90] sm:$0xff]
        %v307 = vld [vmem:[%s192 + $0x98] sm:$0xff]
        %v308 = vld [vmem:[%s192 + $0xa0] sm:$0xff]
        %v309 = vld [vmem:[%s192 + $0xa8] sm:$0xff]
        %v310 = vld [vmem:[%s192 + $0xb0] sm:$0xff]
        %v311 = vld [vmem:[%s192 + $0xb8] sm:$0xff]
        %v312 = vld [vmem:[%s192 + $0xc0] sm:$0xff]
        %v313 = vld [vmem:[%s192 + $0xc8] sm:$0xff]
        %v314 = vld [vmem:[%s192 + $0xd0] sm:$0xff]
        %v315 = vld [vmem:[%s192 + $0xd8] sm:$0xff]
        %v316 = vld [vmem:[%s192 + $0xe0] sm:$0xff]
        %v317 = vld [vmem:[%s192 + $0xe8] sm:$0xff]
        %v318 = vld [vmem:[%s192 + $0xf0] sm:$0xff]
        %v319 = vld [vmem:[%s192 + $0xf8] sm:$0xff]
        %v320 = vld [vmem:[%s192 + $0x100] sm:$0xff]
        %v321 = vld [vmem:[%s192 + $0x108] sm:$0xff]
        %v322 = vld [vmem:[%s192 + $0x110] sm:$0xff]
        %v323 = vld [vmem:[%s192 + $0x118] sm:$0xff]
        %v324 = vld [vmem:[%s192 + $0x120] sm:$0xff]
        %v325 = vld [vmem:[%s192 + $0x128] sm:$0xff]
        %v326 = vld [vmem:[%s192 + $0x130] sm:$0xff]
        %v327 = vld [vmem:[%s192 + $0x138] sm:$0xff]
        %v328 = vld [vmem:[%s192 + $0x140] sm:$0xff]
        %v329 = vld [vmem:[%s192 + $0x148] sm:$0xff]
        %v330 = vld [vmem:[%s192 + $0x150] sm:$0xff]
        %v331 = vld [vmem:[%s192 + $0x158] sm:$0xff]
        %v332 = vld [vmem:[%s192 + $0x160] sm:$0xff]
        %v333 = vld [vmem:[%s192 + $0x168] sm:$0xff]
        %v334 = vld [vmem:[%s192 + $0x170] sm:$0xff]
        %v335 = vld [vmem:[%s192 + $0x178] sm:$0xff]
        %v336 = vld [vmem:[%s192 + $0x180] sm:$0xff]
        %v337 = vld [vmem:[%s192 + $0x188] sm:$0xff]
        %v338 = vld [vmem:[%s192 + $0x190] sm:$0xff]
        %v339 = vld [vmem:[%s192 + $0x198] sm:$0xff]
        %v340 = vadd.f32 %v236, %v288
        %v341 = vadd.f32 %v237, %v289
        %v342 = vadd.f32 %v238, %v290
        %v343 = vadd.f32 %v239, %v291
        %v344 = vadd.f32 %v240, %v292
        %v345 = vadd.f32 %v241, %v293
        %v346 = vadd.f32 %v242, %v294
        %v347 = vadd.f32 %v243, %v295
        %v348 = vadd.f32 %v244, %v296
        %v349 = vadd.f32 %v245, %v297
        %v350 = vadd.f32 %v246, %v298
        %v351 = vadd.f32 %v247, %v299
        %v352 = vadd.f32 %v248, %v300
        %v353 = vadd.f32 %v249, %v301
        %v354 = vadd.f32 %v250, %v302
        %v355 = vadd.f32 %v251, %v303
        %v356 = vadd.f32 %v252, %v304
        %v357 = vadd.f32 %v253, %v305
        %v358 = vadd.f32 %v254, %v306
        %v359 = vadd.f32 %v255, %v307
        %v360 = vadd.f32 %v256, %v308
        %v361 = vadd.f32 %v257, %v309
        %v362 = vadd.f32 %v258, %v310
        %v363 = vadd.f32 %v259, %v311
        %v364 = vadd.f32 %v260, %v312
        %v365 = vadd.f32 %v261, %v313
        %v366 = vadd.f32 %v262, %v314
        %v367 = vadd.f32 %v263, %v315
        %v368 = vadd.f32 %v264, %v316
        %v369 = vadd.f32 %v265, %v317
        %v370 = vadd.f32 %v266, %v318
        %v371 = vadd.f32 %v267, %v319
        %v372 = vadd.f32 %v268, %v320
        %v373 = vadd.f32 %v269, %v321
        %v374 = vadd.f32 %v270, %v322
        %v375 = vadd.f32 %v271, %v323
        %v376 = vadd.f32 %v272, %v324
        %v377 = vadd.f32 %v273, %v325
        %v378 = vadd.f32 %v274, %v326
        %v379 = vadd.f32 %v275, %v327
        %v380 = vadd.f32 %v276, %v328
        %v381 = vadd.f32 %v277, %v329
        %v382 = vadd.f32 %v278, %v330
        %v383 = vadd.f32 %v279, %v331
        %v384 = vadd.f32 %v280, %v332
        %v385 = vadd.f32 %v281, %v333
        %v386 = vadd.f32 %v282, %v334
        %v387 = vadd.f32 %v283, %v335
        %v388 = vadd.f32 %v284, %v336
        %v389 = vadd.f32 %v285, %v337
        %v390 = vadd.f32 %v286, %v338
        %v391 = vadd.f32 %v287, %v339
        %v392 = vmax.f32 %v340, 0.0
        %v393 = vmax.f32 %v341, 0.0
        %v394 = vmax.f32 %v342, 0.0
        %v395 = vmax.f32 %v343, 0.0
        %v396 = vmax.f32 %v344, 0.0
        %v397 = vmax.f32 %v345, 0.0
        %v398 = vmax.f32 %v346, 0.0
        %v399 = vmax.f32 %v347, 0.0
        %v400 = vmax.f32 %v348, 0.0
        %v401 = vmax.f32 %v349, 0.0
        %v402 = vmax.f32 %v350, 0.0
        %v403 = vmax.f32 %v351, 0.0
        %v404 = vmax.f32 %v352, 0.0
        %v405 = vmax.f32 %v353, 0.0
        %v406 = vmax.f32 %v354, 0.0
        %v407 = vmax.f32 %v355, 0.0
        %v408 = vmax.f32 %v356, 0.0
        %v409 = vmax.f32 %v357, 0.0
        %v410 = vmax.f32 %v358, 0.0
        %v411 = vmax.f32 %v359, 0.0
        %v412 = vmax.f32 %v360, 0.0
        %v413 = vmax.f32 %v361, 0.0
        %v414 = vmax.f32 %v362, 0.0
        %v415 = vmax.f32 %v363, 0.0
        %v416 = vmax.f32 %v364, 0.0
        %v417 = vmax.f32 %v365, 0.0
        %v418 = vmax.f32 %v366, 0.0
        %v419 = vmax.f32 %v367, 0.0
        %v420 = vmax.f32 %v368, 0.0
        %v421 = vmax.f32 %v369, 0.0
        %v422 = vmax.f32 %v370, 0.0
        %v423 = vmax.f32 %v371, 0.0
        %v424 = vmax.f32 %v372, 0.0
        %v425 = vmax.f32 %v373, 0.0
        %v426 = vmax.f32 %v374, 0.0
        %v427 = vmax.f32 %v375, 0.0
        %v428 = vmax.f32 %v376, 0.0
        %v429 = vmax.f32 %v377, 0.0
        %v430 = vmax.f32 %v378, 0.0
        %v431 = vmax.f32 %v379, 0.0
        %v432 = vmax.f32 %v380, 0.0
        %v433 = vmax.f32 %v381, 0.0
        %v434 = vmax.f32 %v382, 0.0
        %v435 = vmax.f32 %v383, 0.0
        %v436 = vmax.f32 %v384, 0.0
        %v437 = vmax.f32 %v385, 0.0
        %v438 = vmax.f32 %v386, 0.0
        %v439 = vmax.f32 %v387, 0.0
        %v440 = vmax.f32 %v388, 0.0
        %v441 = vmax.f32 %v389, 0.0
        %v442 = vmax.f32 %v390, 0.0
        %v443 = vmax.f32 %v391, 0.0
        %444 = vst [vmem:[%s217] sm:$0xff] %v392
        %445 = vst [vmem:[%s217 + $0x8] sm:$0xff] %v393
        %446 = vst [vmem:[%s217 + $0x10] sm:$0xff] %v394
        %447 = vst [vmem:[%s217 + $0x18] sm:$0xff] %v395
        %448 = vst [vmem:[%s217 + $0x20] sm:$0xff] %v396
        %449 = vst [vmem:[%s217 + $0x28] sm:$0xff] %v397
        %450 = vst [vmem:[%s217 + $0x30] sm:$0xff] %v398
        %451 = vst [vmem:[%s217 + $0x38] sm:$0xff] %v399
        %452 = vst [vmem:[%s217 + $0x40] sm:$0xff] %v400
        %453 = vst [vmem:[%s217 + $0x48] sm:$0xff] %v401
        %454 = vst [vmem:[%s217 + $0x50] sm:$0xff] %v402
        %455 = vst [vmem:[%s217 + $0x58] sm:$0xff] %v403
        %456 = vst [vmem:[%s217 + $0x60] sm:$0xff] %v404
        %457 = vst [vmem:[%s217 + $0x68] sm:$0xff] %v405
        %458 = vst [vmem:[%s217 + $0x70] sm:$0xff] %v406
        %459 = vst [vmem:[%s217 + $0x78] sm:$0xff] %v407
        %460 = vst [vmem:[%s217 + $0x80] sm:$0xff] %v408
        %461 = vst [vmem:[%s217 + $0x88] sm:$0xff] %v409
        %462 = vst [vmem:[%s217 + $0x90] sm:$0xff] %v410
        %463 = vst [vmem:[%s217 + $0x98] sm:$0xff] %v411
        %464 = vst [vmem:[%s217 + $0xa0] sm:$0xff] %v412
        %465 = vst [vmem:[%s217 + $0xa8] sm:$0xff] %v413
        %466 = vst [vmem:[%s217 + $0xb0] sm:$0xff] %v414
        %467 = vst [vmem:[%s217 + $0xb8] sm:$0xff] %v415
        %468 = vst [vmem:[%s217 + $0xc0] sm:$0xff] %v416
        %469 = vst [vmem:[%s217 + $0xc8] sm:$0xff] %v417
        %470 = vst [vmem:[%s217 + $0xd0] sm:$0xff] %v418
        %471 = vst [vmem:[%s217 + $0xd8] sm:$0xff] %v419
        %472 = vst [vmem:[%s217 + $0xe0] sm:$0xff] %v420
        %473 = vst [vmem:[%s217 + $0xe8] sm:$0xff] %v421
        %474 = vst [vmem:[%s217 + $0xf0] sm:$0xff] %v422
        %475 = vst [vmem:[%s217 + $0xf8] sm:$0xff] %v423
        %476 = vst [vmem:[%s217 + $0x100] sm:$0xff] %v424
        %477 = vst [vmem:[%s217 + $0x108] sm:$0xff] %v425
        %478 = vst [vmem:[%s217 + $0x110] sm:$0xff] %v426
        %479 = vst [vmem:[%s217 + $0x118] sm:$0xff] %v427
        %480 = vst [vmem:[%s217 + $0x120] sm:$0xff] %v428
        %481 = vst [vmem:[%s217 + $0x128] sm:$0xff] %v429
        %482 = vst [vmem:[%s217 + $0x130] sm:$0xff] %v430
        %483 = vst [vmem:[%s217 + $0x138] sm:$0xff] %v431
        %484 = vst [vmem:[%s217 + $0x140] sm:$0xff] %v432
        %485 = vst [vmem:[%s217 + $0x148] sm:$0xff] %v433
        %486 = vst [vmem:[%s217 + $0x150] sm:$0xff] %v434
        %487 = vst [vmem:[%s217 + $0x158] sm:$0xff] %v435
        %488 = vst [vmem:[%s217 + $0x160] sm:$0xff] %v436
        %489 = vst [vmem:[%s217 + $0x168] sm:$0xff] %v437
        %490 = vst [vmem:[%s217 + $0x170] sm:$0xff] %v438
        %491 = vst [vmem:[%s217 + $0x178] sm:$0xff] %v439
        %492 = vst [vmem:[%s217 + $0x180] sm:$0xff] %v440
        %493 = vst [vmem:[%s217 + $0x188] sm:$0xff] %v441
        %494 = vst [vmem:[%s217 + $0x190] sm:$0xff] %v442
        %495 = vst [vmem:[%s217 + $0x198] sm:$0xff] %v443
        %s496 = sand.u32 %s82, 1
        %s497 = scalar_lea.sflag [#allocation4], %s496
        %s498 = sand.u32 %s82, 1
        %s499 = smul.addr %s498, 416
        %s500 = scalar_lea.vmem [#allocation7], %s499
        // Predicated region
        $region37: #{tpu_custom_call.1} parent=27 // pred_check
          %p501 = pneg %p92
        $region38: #{tpu_custom_call.1} parent=27 // pred_check_branch
          %503 = sbr.rel (%p501) target = $region40
        $region39: #{tpu_custom_call.1} parent=27 // pred_region
          %s504 = smul.u32 13, %s22
          %s505 = ssub.s32 49, %s504
          %p506 = scmp.lt.s32.totalorder %s505, 13
          %s507 = scalar_select %p506, %s505, 13
          %s508 = smul.u32 128, %s507
          %s509 = smul.u32 %s508, 4
          %s511 = ssub.s32 6656, %s509
          %512 = vsyncadd %s497, %s511
          %p513 = scmp.ne.s32.totalorder 0, %s509
          %s514 = smul.addr %s504, 4
          %s515 = smul.addr %s514, 128
          %s516 = scalar_lea.hbm %s2, %s515
          %s517 = smul.u32 32, %s507
          %s518 = sshll.u32 %s500, 4
          %s519 = int_to_ptr.vmem [resolvable:$true] %s518
          %s520 = sshll.u32 %s517, 4
          %524 = dma.vmem_to_hbm [thread:$0]  (%p513), %s519, %s520, %s516, %s497, 512, 512, 32
        $region40: #{tpu_custom_call.1} parent=27 // pred_fallthru
          _
      $region28: #{tpu_custom_call.1} parent=5 // pred_fallthru
        _
      %p525 = scmp.le.s32.totalorder 2, %s17
      // Predicated region
      $region41: #{tpu_custom_call.1} parent=5 // pred_check
        %p526 = pneg %p525
      $region42: #{tpu_custom_call.1} parent=5 // pred_check_branch
        %528 = sbr.rel (%p526) target = $region44
      $region43: #{tpu_custom_call.1} parent=5 // pred_region
        %s529 = ssub.s32 %s17, 2
        // Predicated region
        $region45: #{tpu_custom_call.1} parent=43 // pred_check
          %p530 = pneg %p98
        $region46: #{tpu_custom_call.1} parent=43 // pred_check_branch
          %532 = sbr.rel (%p530) target = $region48
        $region47: #{tpu_custom_call.1} parent=43 // pred_region
          %s533 = sand.u32 %s83, 1
          %s534 = scalar_lea.sflag [#allocation4], %s533
          %s535 = sand.u32 %s83, 1
          %s536 = smul.addr %s535, 416
          %s537 = scalar_lea.vmem [#allocation7], %s536
          %538 = dma.done %s534, 6656
        $region48: #{tpu_custom_call.1} parent=43 // pred_fallthru
          _
      $region44: #{tpu_custom_call.1} parent=5 // pred_fallthru
        _
    $region6: #{tpu_custom_call.1} parent=1 // loop_footer
      %s21 = sadd.s32 1, %s17
    $region7: #{tpu_custom_call.1} parent=1 // loop_footer_branch
      %16 = sbr.rel target = $region3
    $region8: #{tpu_custom_call.1} parent=1 // loop_exit
      _
    %539 = vsyncpa [#allocation3], 1
    %s540 = scalar_lea.sflag [#allocation3], 1
    %541 = vsyncpa %s540, 1
    %542 = vsyncpa [#allocation6], 1
    %s543 = scalar_lea.sflag [#allocation6], 1
    %544 = vsyncpa %s543, 1
    %545 = vsyncpa [#allocation4], 1
    %s546 = scalar_lea.sflag [#allocation4], 1
    %547 = vsyncpa %s546, 1

</llo_original>
